<compile_context>
chip_gen: v6e
topology: v6e:2x2x1
jax: 0.10.0
libtpu: 0.0.40
codegen_flags: <defaults>
</compile_context>

<pallas_src>
import functools

import jax
import jax.numpy as jnp
import numpy as np
from jax.experimental import pallas as pl
from jax.experimental.pallas import tpu as pltpu


def _round_up(x, m):
    return ((x + m - 1) // m) * m


# ---------------------------------------------------------------------------
# Kernel 1: tiled linear  y = x @ w_t + b   (bf16 MXU operands, f32 accumulate)
#   grid = (M/tm, N/tn, K/tk); K is the innermost "arbitrary" axis with a
#   resident f32 accumulator in VMEM scratch.
# ---------------------------------------------------------------------------
def _linear_kernel(x_ref, w_ref, b_ref, o_ref, acc_ref):
    @pl.when(pl.program_id(2) == 0)
    def _():
        acc_ref[...] = jnp.zeros_like(acc_ref)

    acc_ref[...] += jnp.dot(x_ref[...], w_ref[...],
                            preferred_element_type=jnp.float32)

    @pl.when(pl.program_id(2) == pl.num_programs(2) - 1)
    def _():
        o_ref[...] = (acc_ref[...] + b_ref[...]).astype(o_ref.dtype)


def pallas_linear(x, w_t, b, *, out_dtype=jnp.float32, tm=512, tn_max=1024):
    M, K = x.shape
    N = w_t.shape[1]
    x = x.astype(jnp.bfloat16)
    w_t = w_t.astype(jnp.bfloat16)
    b = b.astype(jnp.float32)

    tm = min(tm, _round_up(M, 8))
    m_pad = _round_up(M, tm)
    n_pad = _round_up(N, 128)
    tn = 128
    for cand in (1024, 512, 256, 128):
        if cand <= tn_max and n_pad % cand == 0:
            tn = cand
            break
    if K <= 1024:
        k_pad, tk = K, K
    else:
        k_pad, tk = _round_up(K, 512), 512

    if m_pad != M:
        x = jnp.pad(x, ((0, m_pad - M), (0, 0)))
    if k_pad != K:
        x = jnp.pad(x, ((0, 0), (0, k_pad - K)))
        w_t = jnp.pad(w_t, ((0, k_pad - K), (0, 0)))
    if n_pad != N:
        w_t = jnp.pad(w_t, ((0, 0), (0, n_pad - N)))
        b = jnp.pad(b, (0, n_pad - N))

    out = pl.pallas_call(
        _linear_kernel,
        out_shape=jax.ShapeDtypeStruct((m_pad, n_pad), out_dtype),
        grid=(m_pad // tm, n_pad // tn, k_pad // tk),
        in_specs=[pl.BlockSpec((tm, tk), lambda i, j, k: (i, k)),
                  pl.BlockSpec((tk, tn), lambda i, j, k: (k, j)),
                  pl.BlockSpec((1, tn), lambda i, j, k: (0, j))],
        out_specs=pl.BlockSpec((tm, tn), lambda i, j, k: (i, j)),
        scratch_shapes=[pltpu.VMEM((tm, tn), jnp.float32)],
        compiler_params=pltpu.CompilerParams(
            dimension_semantics=("parallel", "parallel", "arbitrary"),
            vmem_limit_bytes=48 * 1024 * 1024),
    )(x, w_t, b.reshape(1, n_pad))
    return out[:M, :N]


# ---------------------------------------------------------------------------
# Kernel 2: single-direction GRU recurrence (time-major), TB steps per grid step.
#   xp : (T_pad, B, W) bf16 gate-concatenated input projections (W = 3H or 6H)
#   len: (B, 1) f32 sequence lengths (resident)
#   whh: (H, 3H) bf16 pre-transposed hidden weights, columns [r | z | n]
#   bhh: (1, 3H) f32 hidden biases
#   out: (T_pad, B, H) f32, natural time order for both directions
# Backward direction = index_map block reversal + reversed static inner loop,
# with a mask-gated carry (== pack_padded_sequence semantics).
# ---------------------------------------------------------------------------
def _gru_dir_kernel(xp_ref, len_ref, whh_ref, bhh_ref, out_ref, h_ref, *,
                    hidden, tb, dir_off, reverse):
    blk = pl.program_id(0)
    nblk = pl.num_programs(0)

    @pl.when(blk == 0)
    def _():
        h_ref[...] = jnp.zeros_like(h_ref)

    lens = len_ref[...]                                       # (B, 1) f32
    base = (nblk - 1 - blk) * tb if reverse else blk * tb
    order = range(tb - 1, -1, -1) if reverse else range(tb)

    h = h_ref[...]                                            # (B, H) f32
    for s in order:
        x_t = xp_ref[s]                                       # (B, W) bf16
        xr = x_t[:, dir_off:dir_off + hidden].astype(jnp.float32)
        xz = x_t[:, dir_off + hidden:dir_off + 2 * hidden].astype(jnp.float32)
        xn = x_t[:, dir_off + 2 * hidden:dir_off + 3 * hidden].astype(jnp.float32)

        # one fused (B,H)@(H,3H) hidden matmul per step
        g = jnp.dot(h.astype(jnp.bfloat16), whh_ref[...],
                    preferred_element_type=jnp.float32) + bhh_ref[...]
        r = jax.nn.sigmoid(xr + g[:, :hidden])
        z = jax.nn.sigmoid(xz + g[:, hidden:2 * hidden])
        n = jnp.tanh(xn + r * g[:, 2 * hidden:3 * hidden])
        h_cand = (1.0 - z) * n + z * h

        t_f = (base + s).astype(jnp.float32)                  # real time index
        m = (lens > t_f).astype(jnp.float32)                  # (B, 1) validity
        h = m * h_cand + (1.0 - m) * h                        # freeze carry when padded
        out_ref[s] = h * m                                    # padded outputs are zero
    h_ref[...] = h


def gru_direction(proj_bf, lens_col, whh_bf, bhh, *, hidden, reverse, tb=8):
    T_pad, B_pad, width = proj_bf.shape
    nblk = T_pad // tb
    half = 3 * hidden
    dir_idx = 1 if reverse else 0
    split = (half % 128 == 0)       # lane-block the direction half when aligned

    if split:
        xp_block = (tb, B_pad, half)
        if reverse:
            xp_map = lambda i: (nblk - 1 - i, 0, dir_idx)
        else:
            xp_map = lambda i: (i, 0, dir_idx)
        dir_off = 0
    else:
        xp_block = (tb, B_pad, width)
        if reverse:
            xp_map = lambda i: (nblk - 1 - i, 0, 0)
        else:
            xp_map = lambda i: (i, 0, 0)
        dir_off = dir_idx * half

    if reverse:
        out_map = lambda i: (nblk - 1 - i, 0, 0)
    else:
        out_map = lambda i: (i, 0, 0)

    kernel = functools.partial(_gru_dir_kernel, hidden=hidden, tb=tb,
                               dir_off=dir_off, reverse=reverse)
    return pl.pallas_call(
        kernel,
        out_shape=jax.ShapeDtypeStruct((T_pad, B_pad, hidden), jnp.float32),
        grid=(nblk,),
        in_specs=[pl.BlockSpec(xp_block, xp_map),
                  pl.BlockSpec((B_pad, 1), lambda i: (0, 0)),
                  pl.BlockSpec(whh_bf.shape, lambda i: (0, 0)),
                  pl.BlockSpec((1, 3 * hidden), lambda i: (0, 0))],
        out_specs=pl.BlockSpec((tb, B_pad, hidden), out_map),
        scratch_shapes=[pltpu.VMEM((B_pad, hidden), jnp.float32)],
        compiler_params=pltpu.CompilerParams(
            dimension_semantics=("arbitrary",),
            vmem_limit_bytes=48 * 1024 * 1024),
    )(proj_bf, lens_col, whh_bf, bhh)


# ---------------------------------------------------------------------------
# Kernel 3: batch-tiled epilogue
#   masked temporal mean + fused multi-window conv/ReLU/max-pool + fc1 with
#   folded BatchNorm (eval) + pre-computed BoW contribution + optional l2norm.
#   Time is the leading axis of the input block -> window slices are cheap.
# ---------------------------------------------------------------------------
def _epilogue_kernel(x_ref, cnt_ref, cw_ref, cb_ref, pm_ref, wg_ref, wc_ref,
                     y0_ref, o_ref, *, w_max, p_out, do_norm):
    # masked mean: padded timesteps of x are already zero; exact divide.
    mean = jnp.sum(x_ref[...], axis=0, dtype=jnp.float32) / cnt_ref[...]

    bb = x_ref.shape[1]
    kc = cw_ref.shape[-1]
    acc = jnp.zeros((p_out, bb, kc), jnp.float32)
    for j in range(w_max):                       # static window offsets
        acc = acc + jax.lax.dot_general(
            x_ref[j:j + p_out], cw_ref[j],
            dimension_numbers=(((2,), (0,)), ((), ())),
            preferred_element_type=jnp.float32)  # (p_out, bb, Kc)
    # ReLU, then zero positions that don't exist for the smaller windows
    # (ReLU output >= 0, so zeros never change the max).
    acc = jnp.maximum(acc + cb_ref[...][None], 0.0) * pm_ref[...]
    con = jnp.max(acc, axis=0)                   # (bb, Kc)

    y = (y0_ref[...]
         + jnp.dot(mean.astype(jnp.bfloat16), wg_ref[...],
                   preferred_element_type=jnp.float32)
         + jnp.dot(con.astype(jnp.bfloat16), wc_ref[...],
                   preferred_element_type=jnp.float32))
    if do_norm:
        y = y * jax.lax.rsqrt(
            jnp.maximum(jnp.sum(y * y, axis=1, keepdims=True), 1e-30))
    o_ref[...] = y


# ---------------------------------------------------------------------------
# Forward pass (Text_multilevel_encoding, eval mode)
# ---------------------------------------------------------------------------
def text_multilevel_encoding_forward(params, cap_wids, cap_bows, lengths,
                                     cap_mask, opt):
    del cap_mask  # lengths drive the masking (as in the reference forward)
    B, T = cap_wids.shape
    H = opt["text_rnn_size"]
    Kn = opt["text_kernel_num"]
    ksizes = list(opt["text_kernel_sizes"])
    rnn_out = 2 * H

    TB = 8
    B_pad = _round_up(B, 8)
    T_pad = _round_up(T, TB)
    wids = jnp.pad(cap_wids, ((0, B_pad - B), (0, T_pad - T)))
    lens = jnp.pad(lengths, (0, B_pad - B)).astype(jnp.float32)

    # 1) word embedding (gather, time-major) -- glue
    emb_tm = params["embed"][wids.T].astype(jnp.float32)        # (T_pad, B_pad, D)
    D = emb_tm.shape[-1]

    # 2) fused fwd+bwd GRU input projection: one tiled bf16 matmul -> bf16 output
    w_ih_t = jnp.concatenate([params["w_ih_f"], params["w_ih_b"]], axis=0).T
    b_ih = jnp.concatenate([params["b_ih_f"], params["b_ih_b"]])
    proj = pallas_linear(emb_tm.reshape(T_pad * B_pad, D), w_ih_t, b_ih,
                         out_dtype=jnp.bfloat16)                # (T_pad*B_pad, 6H)
    proj = proj.reshape(T_pad, B_pad, 6 * H)

    # 3) GRU recurrences (forward + backward)
    lens_col = lens.reshape(B_pad, 1)
    whh_f = params["w_hh_f"].T.astype(jnp.bfloat16)             # (H, 3H)
    whh_b = params["w_hh_b"].T.astype(jnp.bfloat16)
    bhh_f = params["b_hh_f"].reshape(1, 3 * H)
    bhh_b = params["b_hh_b"].reshape(1, 3 * H)
    out_f = gru_direction(proj, lens_col, whh_f, bhh_f, hidden=H,
                          reverse=False, tb=TB)
    out_b = gru_direction(proj, lens_col, whh_b, bhh_b, hidden=H,
                          reverse=True, tb=TB)
    gru_tm = jnp.concatenate([out_f, out_b], axis=-1)           # (T_pad, B_pad, 2H)

    # 4) epilogue preparation (dropout = identity in eval mode)
    w_max = max(ksizes)
    pad_t = w_max - 1
    p_out = T + w_max - 1
    Kc = Kn * len(ksizes)
    Kc_pad = _round_up(Kc, 128)
    x_tm = jnp.pad(gru_tm.astype(jnp.bfloat16),
                   ((pad_t, pad_t), (0, 0), (0, 0)))            # (Tp, B_pad, 2H)
    Tp = x_tm.shape[0]
    cnt = jnp.maximum(lens, 1.0).reshape(B_pad, 1)

    # fuse the three conv branches: window-offset aligned weights + position mask
    conv_w = jnp.zeros((w_max, rnn_out, Kc_pad), jnp.float32)
    conv_b = jnp.zeros((Kc_pad,), jnp.float32)
    pos_mask = np.zeros((p_out, 1, Kc_pad), np.float32)
    for bi, w in enumerate(ksizes):
        off = w_max - w
        conv_w = conv_w.at[off:off + w, :, bi * Kn:(bi + 1) * Kn].set(
            params[f"conv_w_{w}"])
        conv_b = conv_b.at[bi * Kn:(bi + 1) * Kn].set(params[f"conv_b_{w}"])
        pos_mask[:T + w - 1, 0, bi * Kn:(bi + 1) * Kn] = 1.0
    conv_w = conv_w.astype(jnp.bfloat16)
    conv_b = conv_b.reshape(1, Kc_pad)
    pos_mask = jnp.asarray(pos_mask)

    # fold BatchNorm1d (eval) into fc1; pre-transpose; pad output lanes to 128
    out_dim = params["fc1_w"].shape[0]
    s = params["bn_gamma"] * jax.lax.rsqrt(params["bn_var"] + 1e-5)
    w_eff_t = (params["fc1_w"] * s[:, None]).T                  # (in_dim, out_dim)
    b_eff = (params["fc1_b"] - params["bn_mean"]) * s + params["bn_beta"]
    out_pad = _round_up(out_dim, 128)
    w_eff_t = jnp.pad(w_eff_t, ((0, 0), (0, out_pad - out_dim)))
    b_eff = jnp.pad(b_eff, (0, out_pad - out_dim))

    wg = w_eff_t[:rnn_out].astype(jnp.bfloat16)                 # (2H, out_pad)
    wc = jnp.pad(w_eff_t[rnn_out:rnn_out + Kc],
                 ((0, Kc_pad - Kc), (0, 0))).astype(jnp.bfloat16)

    use_bow = opt["concate"] == "full"
    if use_bow:
        # bag-of-words matmul streamed by the tiled linear (wb never resident whole)
        wb_t = w_eff_t[rnn_out + Kc:]                           # (V, out_pad)
        bows = jnp.pad(cap_bows.astype(jnp.float32), ((0, B_pad - B), (0, 0)))
        y0 = pallas_linear(bows, wb_t, b_eff)                   # (B_pad, out_pad)
    else:
        y0 = jnp.tile(b_eff.reshape(1, out_pad), (B_pad, 1))

    bb = 8
    kernel = functools.partial(_epilogue_kernel, w_max=w_max, p_out=p_out,
                               do_norm=bool(opt["text_norm"]))
    feats = pl.pallas_call(
        kernel,
        out_shape=jax.ShapeDtypeStruct((B_pad, out_pad), jnp.float32),
        grid=(B_pad // bb,),
        in_specs=[pl.BlockSpec((Tp, bb, rnn_out), lambda i: (0, i, 0)),
                  pl.BlockSpec((bb, 1), lambda i: (i, 0)),
                  pl.BlockSpec((w_max, rnn_out, Kc_pad), lambda i: (0, 0, 0)),
                  pl.BlockSpec((1, Kc_pad), lambda i: (0, 0)),
                  pl.BlockSpec((p_out, 1, Kc_pad), lambda i: (0, 0, 0)),
                  pl.BlockSpec((rnn_out, out_pad), lambda i: (0, 0)),
                  pl.BlockSpec((Kc_pad, out_pad), lambda i: (0, 0)),
                  pl.BlockSpec((bb, out_pad), lambda i: (i, 0))],
        out_specs=pl.BlockSpec((bb, out_pad), lambda i: (i, 0)),
        compiler_params=pltpu.CompilerParams(
            dimension_semantics=("parallel",),
            vmem_limit_bytes=64 * 1024 * 1024),
    )(x_tm, cnt, conv_w, conv_b, pos_mask, wg, wc, y0)
    return feats[:B, :out_dim]


# ---------------------------------------------------------------------------
# Deterministic parameter initialization (shapes per nn.Module __init__)
# ---------------------------------------------------------------------------
def init_params(key, opt):
    keys = jax.random.split(key, 16)
    V, D, H = opt["vocab_size"], opt["word_dim"], opt["text_rnn_size"]
    Kn = opt["text_kernel_num"]
    rnn_out = 2 * H
    in_dim, out_dim = opt["text_mapping_layers"]
    k_rnn = 1.0 / np.sqrt(H)

    params = {
        "embed": jax.random.uniform(keys[0], (V, D), jnp.float32, -0.1, 0.1),
        # GRU forward / backward directions (PyTorch gate order r, z, n)
        "w_ih_f": jax.random.uniform(keys[1], (3 * H, D), jnp.float32, -k_rnn, k_rnn),
        "w_hh_f": jax.random.uniform(keys[2], (3 * H, H), jnp.float32, -k_rnn, k_rnn),
        "b_ih_f": jax.random.uniform(keys[3], (3 * H,), jnp.float32, -k_rnn, k_rnn),
        "b_hh_f": jax.random.uniform(keys[4], (3 * H,), jnp.float32, -k_rnn, k_rnn),
        "w_ih_b": jax.random.uniform(keys[5], (3 * H, D), jnp.float32, -k_rnn, k_rnn),
        "w_hh_b": jax.random.uniform(keys[6], (3 * H, H), jnp.float32, -k_rnn, k_rnn),
        "b_ih_b": jax.random.uniform(keys[7], (3 * H,), jnp.float32, -k_rnn, k_rnn),
        "b_hh_b": jax.random.uniform(keys[8], (3 * H,), jnp.float32, -k_rnn, k_rnn),
    }

    # Conv2d(1, Kn, (w, 2H)) -> stored as (w, 2H, Kn)
    for i, w_size in enumerate(opt["text_kernel_sizes"]):
        fan_in = 1 * w_size * rnn_out
        kc = 1.0 / np.sqrt(fan_in)
        params[f"conv_w_{w_size}"] = jax.random.uniform(
            keys[9 + i], (w_size, rnn_out, Kn), jnp.float32, -kc, kc)
        params[f"conv_b_{w_size}"] = jnp.zeros((Kn,), jnp.float32)

    # MFC fc1 (xavier_init_fc) + BatchNorm1d defaults (running stats)
    r = np.sqrt(6.0) / np.sqrt(in_dim + out_dim)
    params["fc1_w"] = jax.random.uniform(keys[13], (out_dim, in_dim), jnp.float32, -r, r)
    params["fc1_b"] = jnp.zeros((out_dim,), jnp.float32)
    params["bn_gamma"] = jnp.ones((out_dim,), jnp.float32)
    params["bn_beta"] = jnp.zeros((out_dim,), jnp.float32)
    params["bn_mean"] = jnp.zeros((out_dim,), jnp.float32)
    params["bn_var"] = jnp.ones((out_dim,), jnp.float32)
    return params


# ---------------------------------------------------------------------------
if __name__ == "__main__":
    opt = dict(
        vocab_size=50,
        word_dim=32,
        text_rnn_size=16,          # rnn_output_size = 32
        text_kernel_num=8,
        text_kernel_sizes=[2, 3, 4],
        dropout=0.2,               # eval mode -> identity
        concate="full",
        text_norm=True,
    )
    bow_dim = opt["vocab_size"]
    mapping_in = (2 * opt["text_rnn_size"]
                  + opt["text_kernel_num"] * len(opt["text_kernel_sizes"])
                  + bow_dim)
    mapping_out = 48
    opt["text_mapping_layers"] = [mapping_in, mapping_out]

    key = jax.random.PRNGKey(0)
    k_par, k_ids, k_bow = jax.random.split(key, 3)
    params = init_params(k_par, opt)

    B, T = 2, 8
    lengths = jnp.array([8, 5], dtype=jnp.int32)      # sorted desc (packed-seq convention)
    cap_mask = (jnp.arange(T)[None, :] < lengths[:, None]).astype(jnp.float32)
    cap_wids = jax.random.randint(k_ids, (B, T), 0, opt["vocab_size"], dtype=jnp.int32)
    cap_wids = cap_wids * cap_mask.astype(jnp.int32)  # pad token 0 beyond lengths
    cap_bows = jax.random.uniform(k_bow, (B, bow_dim), jnp.float32)

    feats = text_multilevel_encoding_forward(params, cap_wids, cap_bows,
                                             lengths, cap_mask, opt)
    feats = jax.block_until_ready(feats)
    assert feats.shape == (B, mapping_out), feats.shape
    assert bool(jnp.all(jnp.isfinite(feats)))
    # TODO(synk): dropout / BatchNorm1d implemented in eval (inference) semantics only.
    print("KERNEL_OK")
</pallas_src>

<mosaic_0001>
module attributes {stable_mosaic.version = 11 : i64} {
  func.func @_linear_kernel(%arg0: i32, %arg1: i32, %arg2: i32, %arg3: memref<64x32xbf16, #tpu.memory_space<vmem>>, %arg4: memref<32x128xbf16, #tpu.memory_space<vmem>>, %arg5: memref<1x128xf32, #tpu.memory_space<vmem>>, %arg6: memref<64x128xbf16, #tpu.memory_space<vmem>>, %arg7: memref<64x128xf32, #tpu.memory_space<vmem>>) attributes {dimension_semantics = [#tpu.dimension_semantics<parallel>, #tpu.dimension_semantics<parallel>, #tpu.dimension_semantics<arbitrary>], iteration_bounds = array<i64: 1, 1, 1>, scalar_prefetch = 0 : i64, scratch_operands = 1 : i64, tpu.core_type = #tpu.core_type<tc>, window_params = [{transform_indices = @transform_0, window_bounds = array<i64: 64, 32>}, {transform_indices = @transform_1, window_bounds = array<i64: 32, 128>}, {transform_indices = @transform_2, window_bounds = array<i64: 1, 128>}, {transform_indices = @transform_3, window_bounds = array<i64: 64, 128>}]} {
    %c0_i32 = arith.constant 0 : i32
    %0 = arith.cmpi eq, %arg2, %c0_i32 : i32
    %1 = arith.extui %0 : i1 to i32
    %c0_i32_0 = arith.constant 0 : i32
    %2 = arith.cmpi ne, %1, %c0_i32_0 : i32
    scf.if %2 {
      %cst_10 = arith.constant 0.000000e+00 : f32
      %12 = vector.broadcast %cst_10 : f32 to vector<64x128xf32>
      %c0_11 = arith.constant 0 : index
      %c0_12 = arith.constant 0 : index
      %13 = vector.load %arg7[%c0_11, %c0_12] : memref<64x128xf32, #tpu.memory_space<vmem>>, vector<64x128xf32>
      tpu.vector_store %arg7[%c0_11, %c0_12], %12 {strides = array<i32>} : memref<64x128xf32, #tpu.memory_space<vmem>>, vector<64x128xf32>,
    } else {
    }
    %c0 = arith.constant 0 : index
    %c0_1 = arith.constant 0 : index
    %3 = vector.load %arg7[%c0, %c0_1] : memref<64x128xf32, #tpu.memory_space<vmem>>, vector<64x128xf32>
    %c0_2 = arith.constant 0 : index
    %c0_3 = arith.constant 0 : index
    %4 = vector.load %arg3[%c0_2, %c0_3] : memref<64x32xbf16, #tpu.memory_space<vmem>>, vector<64x32xbf16>
    %c0_4 = arith.constant 0 : index
    %c0_5 = arith.constant 0 : index
    %5 = vector.load %arg4[%c0_4, %c0_5] : memref<32x128xbf16, #tpu.memory_space<vmem>>, vector<32x128xbf16>
    %cst = arith.constant dense<0.000000e+00> : vector<64x128xf32>
    %6 = tpu.matmul %4, %5, %cst {dimension_numbers = #tpu.dot_dimension_numbers<[1], [0], [0], [1], [0, 0, 1, 1], [], []>} : vector<64x32xbf16>, vector<32x128xbf16>, vector<64x128xf32> -> vector<64x128xf32>
    %7 = arith.addf %3, %6 : vector<64x128xf32>
    %c0_6 = arith.constant 0 : index
    %c0_7 = arith.constant 0 : index
    %8 = vector.load %arg7[%c0_6, %c0_7] : memref<64x128xf32, #tpu.memory_space<vmem>>, vector<64x128xf32>
    tpu.vector_store %arg7[%c0_6, %c0_7], %7 {strides = array<i32>} : memref<64x128xf32, #tpu.memory_space<vmem>>, vector<64x128xf32>,
    %c0_i32_8 = arith.constant 0 : i32
    %9 = arith.cmpi eq, %arg2, %c0_i32_8 : i32
    %10 = arith.extui %9 : i1 to i32
    %c0_i32_9 = arith.constant 0 : i32
    %11 = arith.cmpi ne, %10, %c0_i32_9 : i32
    scf.if %11 {
      %c0_10 = arith.constant 0 : index
      %c0_11 = arith.constant 0 : index
      %12 = vector.load %arg7[%c0_10, %c0_11] : memref<64x128xf32, #tpu.memory_space<vmem>>, vector<64x128xf32>
      %c0_12 = arith.constant 0 : index
      %c0_13 = arith.constant 0 : index
      %13 = vector.load %arg5[%c0_12, %c0_13] : memref<1x128xf32, #tpu.memory_space<vmem>>, vector<1x128xf32>
      %14 = vector.broadcast %13 : vector<1x128xf32> to vector<64x128xf32>
      %15 = arith.addf %12, %14 : vector<64x128xf32>
      %16 = arith.truncf %15 : vector<64x128xf32> to vector<64x128xbf16>
      %c0_14 = arith.constant 0 : index
      %c0_15 = arith.constant 0 : index
      %17 = vector.load %arg6[%c0_14, %c0_15] : memref<64x128xbf16, #tpu.memory_space<vmem>>, vector<64x128xbf16>
      tpu.vector_store %arg6[%c0_14, %c0_15], %16 {strides = array<i32>} : memref<64x128xbf16, #tpu.memory_space<vmem>>, vector<64x128xbf16>,
    } else {
    }
    return
  }
  func.func @transform_0(%arg0: i32, %arg1: i32, %arg2: i32) -> (i32, i32) {
    %c0_i32 = arith.constant 0 : i32
    return %arg0, %arg2 : i32, i32
  }
  func.func @transform_1(%arg0: i32, %arg1: i32, %arg2: i32) -> (i32, i32) {
    %c0_i32 = arith.constant 0 : i32
    return %arg2, %arg1 : i32, i32
  }
  func.func @transform_2(%arg0: i32, %arg1: i32, %arg2: i32) -> (i32, i32) {
    %c0_i32 = arith.constant 0 : i32
    %c0_i32_0 = arith.constant 0 : i32
    return %c0_i32, %arg1 : i32, i32
  }
  func.func @transform_3(%arg0: i32, %arg1: i32, %arg2: i32) -> (i32, i32) {
    %c0_i32 = arith.constant 0 : i32
    return %arg0, %arg1 : i32, i32
  }
}

</mosaic_0001>

<llo_original>
// kernel: tpu_custom_call.1
$region0: #{tpu_custom_call.1}
  #allocation0 [shape = 'u32[]', space=smem, size = 0x4, offset = 0x4, fixed_abs, tag = 'smem constant byte address 0x4 - core index']
  #allocation1 [shape = 'u32[144,128]{1,0:T(1,128)}', space=vmem, size = 0x12000, scoped, tag = 'internal scratch']
  #allocation2 [shape = 'f32[64,128]{1,0:T(8,128)}', space=vmem, size = 0x8000, scoped, tag = 'scratch operand']
  %s0 = inlined_call_operand.vmem [shape: bf16[64,32], index: 0, kind: input, shape index: {}]
  %s1 = inlined_call_operand.vmem [shape: bf16[32,128], index: 1, kind: input, shape index: {}]
  %s2 = inlined_call_operand.vmem [shape: f32[1,128], index: 2, kind: input, shape index: {}]
  %s3 = inlined_call_operand.hbm [shape: bf16[64,128], index: 3, kind: output, shape index: {}]
  %s4 = sld [smem:[#allocation0]]
  $region30: #{tpu_custom_call.1} parent=0
    _
  %s6 = ssub.s32 1, %s4
  %s7 = scalar_select 0, %s6, %s4
  $region1: #{tpu_custom_call.1} parent=0
    #allocation3 [shape = 'u8[16384]{0}', space=vmem, size = 0x4000, scoped, tag = 'output window, operand 0, single buffered']
    #allocation4 [shape = 's32[1]{0}', space=sflag, size = 0x4, scoped, tag = 'scoped memory for tpu_custom_call.1']
    %8 = vsyncpa [#allocation4], 0
    // Predicated region
    $region2: #{tpu_custom_call.1} parent=1 // pred_check
      _
    $region3: #{tpu_custom_call.1} parent=1 // pred_check_branch
      %10 = sbr.rel (0) target = $region5
    $region4: #{tpu_custom_call.1} parent=1 // pred_region
      _
    $region5: #{tpu_custom_call.1} parent=1 // pred_fallthru
      _
    // Predicated region
    $region6: #{tpu_custom_call.1} parent=1 // pred_check
      _
    $region7: #{tpu_custom_call.1} parent=1 // pred_check_branch
      %12 = sbr.rel (0) target = $region9
    $region8: #{tpu_custom_call.1} parent=1 // pred_region
      _
    $region9: #{tpu_custom_call.1} parent=1 // pred_fallthru
      _
    // Predicated region
    $region10: #{tpu_custom_call.1} parent=1 // pred_check
      _
    $region11: #{tpu_custom_call.1} parent=1 // pred_check_branch
      %14 = sbr.rel (0) target = $region13
    $region12: #{tpu_custom_call.1} parent=1 // pred_region
      _
    $region13: #{tpu_custom_call.1} parent=1 // pred_fallthru
      _
    %p16 = scmp.eq.s32.totalorder 0, 0
    // Predicated region
    $region14: #{tpu_custom_call.1} parent=1 // pred_check
      %p17 = pneg %p16
    $region15: #{tpu_custom_call.1} parent=1 // pred_check_branch
      %19 = sbr.rel (%p17) target = $region17
    $region16: #{tpu_custom_call.1} parent=1 // pred_region
      %20 = vst [vmem:[#allocation2] sm:$0xff] 0.0
      %21 = vst [vmem:[#allocation2 + $0x8] sm:$0xff] 0.0
      %22 = vst [vmem:[#allocation2 + $0x10] sm:$0xff] 0.0
      %23 = vst [vmem:[#allocation2 + $0x18] sm:$0xff] 0.0
      %24 = vst [vmem:[#allocation2 + $0x20] sm:$0xff] 0.0
      %25 = vst [vmem:[#allocation2 + $0x28] sm:$0xff] 0.0
      %26 = vst [vmem:[#allocation2 + $0x30] sm:$0xff] 0.0
      %27 = vst [vmem:[#allocation2 + $0x38] sm:$0xff] 0.0
    $region17: #{tpu_custom_call.1} parent=1 // pred_fallthru
      _
    %v28 = vld [vmem:[#allocation2] sm:$0xff]
    %v29 = vld [vmem:[#allocation2 + $0x8] sm:$0xff]
    %v30 = vld [vmem:[#allocation2 + $0x10] sm:$0xff]
    %v31 = vld [vmem:[#allocation2 + $0x18] sm:$0xff]
    %v32 = vld [vmem:[#allocation2 + $0x20] sm:$0xff]
    %v33 = vld [vmem:[#allocation2 + $0x28] sm:$0xff]
    %v34 = vld [vmem:[#allocation2 + $0x30] sm:$0xff]
    %v35 = vld [vmem:[#allocation2 + $0x38] sm:$0xff]
    %v36 = vld [vmem:[%s0] sm:$0xf]
    %v37 = vld [vmem:[%s0 + $0x4] sm:$0xf]
    %v38 = vld [vmem:[%s0 + $0x8] sm:$0xf]
    %v39 = vld [vmem:[%s0 + $0xc] sm:$0xf]
    %v40 = vld [vmem:[%s0 + $0x10] sm:$0xf]
    %v41 = vld [vmem:[%s0 + $0x14] sm:$0xf]
    %v42 = vld [vmem:[%s0 + $0x18] sm:$0xf]
    %v43 = vld [vmem:[%s0 + $0x1c] sm:$0xf]
    %v44 = vld [vmem:[%s1] sm:$0xf]
    %v45 = vld [vmem:[%s1 + $0x4] sm:$0xf]
    %v46 = vld [vmem:[%s1 + $0x8] sm:$0xf]
    %v47 = vld [vmem:[%s1 + $0xc] sm:$0xf]
    %v56 = vunpack.c.l.b16 %v36
    %v57 = vunpack.c.l.b16 %v37
    %v58 = vunpack.c.l.b16 %v38
    %v59 = vunpack.c.l.b16 %v39
    %v60 = vunpack.c.l.b16 %v40
    %v61 = vunpack.c.l.b16 %v41
    %v62 = vunpack.c.l.b16 %v42
    %v63 = vunpack.c.l.b16 %v43
    %v64 = vpack.c.b16 %v57, %v56
    %v65 = vpack.c.b16 %v59, %v58
    %v66 = vpack.c.b16 %v61, %v60
    %v67 = vpack.c.b16 %v63, %v62
    %v72 = vunpack.c.l.b16 %v44
    %v73 = vunpack.c.l.b16 %v45
    %v74 = vunpack.c.l.b16 %v46
    %v75 = vunpack.c.l.b16 %v47
    %v76 = vpack.c.b16 %v73, %v72
    %v77 = vpack.c.b16 %v75, %v74
    %vm80 = vcmask 261120
    %v82 = vsel %vm80, %v64, 0
    %v85 = vsel %vm80, %v65, 0
    %v88 = vsel %vm80, %v66, 0
    %v91 = vsel %vm80, %v67, 0
    %93 = vmatprep.subr.bf16.mxu0 0
    %94 = vmatpush1.bf16.msra.mxu0 0
    %95 = vmatprep.subr.bf16.mxu0 0
    %96 = vmatpush1.bf16.msra.mxu0 0
    %97 = vmatprep.subr.bf16.mxu0 0
    %98 = vmatpush1.bf16.msra.mxu0 0
    %99 = vmatprep.subr.bf16.mxu0 0
    %100 = vmatpush1.bf16.msra.mxu0 0
    %101 = vmatprep.subr.bf16.mxu0 0
    %102 = vmatpush1.bf16.msra.mxu0 0
    %103 = vmatprep.subr.bf16.mxu0 0
    %104 = vmatpush1.bf16.msra.mxu0 0
    %105 = vmatprep.subr.bf16.mxu0 0
    %106 = vmatpush1.bf16.msra.mxu0 %v77
    %107 = vmatprep.subr.bf16.mxu0 0
    %108 = vmatpush1.bf16.msra.mxu0 %v76
    %109 = vmatprep.subr.bf16.mxu0 0
    %110 = vmatpush2.bf16.msra.mxu0 0
    %111 = vmatprep.subr.bf16.mxu0 0
    %112 = vmatpush2.bf16.msra.mxu0 0
    %113 = vmatprep.subr.bf16.mxu0 0
    %114 = vmatpush2.bf16.msra.mxu0 0
    %115 = vmatprep.subr.bf16.mxu0 0
    %116 = vmatpush2.bf16.msra.mxu0 0
    %117 = vmatprep.subr.bf16.mxu0 0
    %118 = vmatpush2.bf16.msra.mxu0 0
    %119 = vmatprep.subr.bf16.mxu0 0
    %120 = vmatpush2.bf16.msra.mxu0 0
    %121 = vmatprep.subr.bf16.mxu0 0
    %122 = vmatpush2.bf16.msra.mxu0 0
    %123 = vmatprep.subr.bf16.mxu0 0
    %124 = vmatpush2.bf16.msra.mxu0 0
    %125 = vmatprep.mubr.bf16.mxu0 0
    %126 = vmatmul.mubr.bf16.gmra.mxu0 %v82
    %v127 = vpop.f32.mrf.mxu0
    %v128 = vadd.f32 0.0, %v127
    %v129 = vpop.f32.mrf.mxu0
    %v130 = vpop.f32.mrf.mxu0
    %v131 = vadd.f32 0.0, %v130
    %v132 = vpop.f32.mrf.mxu0
    %133 = vmatprep.mubr.bf16.mxu0 0
    %134 = vmatmul.mubr.bf16.gmra.mxu0 %v85
    %v135 = vpop.f32.mrf.mxu0
    %v136 = vadd.f32 0.0, %v135
    %v137 = vpop.f32.mrf.mxu0
    %v138 = vpop.f32.mrf.mxu0
    %v139 = vadd.f32 0.0, %v138
    %v140 = vpop.f32.mrf.mxu0
    %141 = vmatprep.mubr.bf16.mxu0 0
    %142 = vmatmul.mubr.bf16.gmra.mxu0 %v88
    %v143 = vpop.f32.mrf.mxu0
    %v144 = vadd.f32 0.0, %v143
    %v145 = vpop.f32.mrf.mxu0
    %v146 = vpop.f32.mrf.mxu0
    %v147 = vadd.f32 0.0, %v146
    %v148 = vpop.f32.mrf.mxu0
    %149 = vmatprep.mubr.bf16.mxu0 0
    %150 = vmatmul.mubr.bf16.gmra.mxu0 %v91
    %v151 = vpop.f32.mrf.mxu0
    %v152 = vadd.f32 0.0, %v151
    %v153 = vpop.f32.mrf.mxu0
    %v154 = vpop.f32.mrf.mxu0
    %v155 = vadd.f32 0.0, %v154
    %v156 = vpop.f32.mrf.mxu0
    %157 = vdwg.mxu0
    %v158 = vadd.f32 %v28, %v128
    %v159 = vadd.f32 %v29, %v131
    %v160 = vadd.f32 %v30, %v136
    %v161 = vadd.f32 %v31, %v139
    %v162 = vadd.f32 %v32, %v144
    %v163 = vadd.f32 %v33, %v147
    %v164 = vadd.f32 %v34, %v152
    %v165 = vadd.f32 %v35, %v155
    %166 = vst [vmem:[#allocation2] sm:$0xff] %v158
    %167 = vst [vmem:[#allocation2 + $0x8] sm:$0xff] %v159
    %168 = vst [vmem:[#allocation2 + $0x10] sm:$0xff] %v160
    %169 = vst [vmem:[#allocation2 + $0x18] sm:$0xff] %v161
    %170 = vst [vmem:[#allocation2 + $0x20] sm:$0xff] %v162
    %171 = vst [vmem:[#allocation2 + $0x28] sm:$0xff] %v163
    %172 = vst [vmem:[#allocation2 + $0x30] sm:$0xff] %v164
    %173 = vst [vmem:[#allocation2 + $0x38] sm:$0xff] %v165
    // Predicated region
    $region18: #{tpu_custom_call.1} parent=1 // pred_check
      %p174 = pneg %p16
    $region19: #{tpu_custom_call.1} parent=1 // pred_check_branch
      %176 = sbr.rel (%p174) target = $region21
    $region20: #{tpu_custom_call.1} parent=1 // pred_region
      %v177 = vld [vmem:[#allocation2] sm:$0xff]
      %v178 = vld [vmem:[#allocation2 + $0x8] sm:$0xff]
      %v179 = vld [vmem:[#allocation2 + $0x10] sm:$0xff]
      %v180 = vld [vmem:[#allocation2 + $0x18] sm:$0xff]
      %v181 = vld [vmem:[#allocation2 + $0x20] sm:$0xff]
      %v182 = vld [vmem:[#allocation2 + $0x28] sm:$0xff]
      %v183 = vld [vmem:[#allocation2 + $0x30] sm:$0xff]
      %v184 = vld [vmem:[#allocation2 + $0x38] sm:$0xff]
      %v185 = vld [vmem:[%s2] sm:$0x1]
      %v187 = vlaneseq
      %v188 = vshrl.u32 %v187, 7
      %v189 = vsub.s32 0, %v188
      %v190 = vrot.slane %v185, %v189
      %v192 = vadd.f32 %v177, %v190
      %v193 = vadd.f32 %v178, %v190
      %v194 = vadd.f32 %v179, %v190
      %v195 = vadd.f32 %v180, %v190
      %v196 = vadd.f32 %v181, %v190
      %v197 = vadd.f32 %v182, %v190
      %v198 = vadd.f32 %v183, %v190
      %v199 = vadd.f32 %v184, %v190
      %v200 = vpack.c.bf16 %v193, %v192
      %v201 = vpack.c.bf16 %v195, %v194
      %v202 = vpack.c.bf16 %v197, %v196
      %v203 = vpack.c.bf16 %v199, %v198
      %v208 = vunpack.c.l.b16 %v200
      %v209 = vunpack.c.h.b16 %v200
      %v210 = vunpack.c.l.b16 %v201
      %v211 = vunpack.c.h.b16 %v201
      %v212 = vunpack.c.l.b16 %v202
      %v213 = vunpack.c.h.b16 %v202
      %v214 = vunpack.c.l.b16 %v203
      %v215 = vunpack.c.h.b16 %v203
      %v216 = vpack.c.b16 %v208, %v208
      %v217 = vpack.c.b16 %v209, %v209
      %v218 = vpack.c.b16 %v210, %v210
      %v219 = vpack.c.b16 %v211, %v211
      %v220 = vpack.c.b16 %v212, %v212
      %v221 = vpack.c.b16 %v213, %v213
      %v222 = vpack.c.b16 %v214, %v214
      %v223 = vpack.c.b16 %v215, %v215
      %232 = vst [vmem:[#allocation3] sm:$0xf] %v216
      %233 = vst [vmem:[#allocation3 + $0x4] sm:$0xf] %v217
      %234 = vst [vmem:[#allocation3 + $0x8] sm:$0xf] %v218
      %235 = vst [vmem:[#allocation3 + $0xc] sm:$0xf] %v219
      %236 = vst [vmem:[#allocation3 + $0x10] sm:$0xf] %v220
      %237 = vst [vmem:[#allocation3 + $0x14] sm:$0xf] %v221
      %238 = vst [vmem:[#allocation3 + $0x18] sm:$0xf] %v222
      %239 = vst [vmem:[#allocation3 + $0x1c] sm:$0xf] %v223
    $region21: #{tpu_custom_call.1} parent=1 // pred_fallthru
      _
    // Predicated region
    $region22: #{tpu_custom_call.1} parent=1 // pred_check
      _
    $region23: #{tpu_custom_call.1} parent=1 // pred_check_branch
      %241 = sbr.rel (0) target = $region25
    $region24: #{tpu_custom_call.1} parent=1 // pred_region
      %s243 = ssub.s32 512, 512
      %244 = vsyncadd [#allocation4], %s243
      %s245 = sshll.u32 [#allocation3], 4
      %s246 = int_to_ptr.vmem [resolvable:$true] %s245
      %251 = dma.vmem_to_hbm [thread:$0]  %s246, 512, %s3, [#allocation4], 64, 64, 4
    $region25: #{tpu_custom_call.1} parent=1 // pred_fallthru
      _
    // Predicated region
    $region26: #{tpu_custom_call.1} parent=1 // pred_check
      _
    $region27: #{tpu_custom_call.1} parent=1 // pred_check_branch
      %253 = sbr.rel (0) target = $region29
    $region28: #{tpu_custom_call.1} parent=1 // pred_region
      %254 = dma.done [#allocation4], 512
    $region29: #{tpu_custom_call.1} parent=1 // pred_fallthru
      _
    %255 = vsyncpa [#allocation4], 1

</llo_original>
